<compile_context>
chip_gen: v5e
topology: v5e:2x2
jax: 0.10.0
libtpu: 0.0.40
codegen_flags: <defaults>
</compile_context>

<pallas_src>
import functools

import numpy as np
import jax
import jax.numpy as jnp
from jax import lax
from jax.experimental import pallas as pl
from jax.experimental.pallas import tpu as pltpu


def _round_up(a: int, b: int) -> int:
    return (a + b - 1) // b * b


def _as_uint32(bits):
    """Reinterpret random bits as uint32 (trace-time no-op if already uint32)."""
    if bits.dtype != jnp.uint32:
        bits = pltpu.bitcast(bits, jnp.uint32)
    return bits


# -----------------------------------------------------------------------------
# One-time feature probes (memoized).  Tiny pallas_calls that tell us whether
# (a) the in-kernel TPU PRNG and (b) BlockSpec(pipeline_mode=Buffered(1)) lower
# in the current environment (real Mosaic vs. interpreter).
# -----------------------------------------------------------------------------
@functools.lru_cache(maxsize=None)
def _has_kernel_prng() -> bool:
    try:
        def probe(seed_ref, x_ref, o_ref):
            pltpu.prng_seed(seed_ref[0] + pl.program_id(0))
            bits = _as_uint32(pltpu.prng_random_bits((8, 128)))
            o_ref[...] = x_ref[...] + (bits >> 31).astype(jnp.float32)

        out = pl.pallas_call(
            probe,
            grid_spec=pltpu.PrefetchScalarGridSpec(
                num_scalar_prefetch=1,
                grid=(1,),
                in_specs=[pl.BlockSpec((8, 128), lambda i, *_: (0, 0))],
                out_specs=pl.BlockSpec((8, 128), lambda i, *_: (0, 0))),
            out_shape=jax.ShapeDtypeStruct((8, 128), jnp.float32),
        )(jnp.zeros((1,), jnp.int32), jnp.zeros((8, 128), jnp.float32))
        out = jax.block_until_ready(out)
        return bool(jnp.all(jnp.isfinite(out)))
    except Exception:
        return False


@functools.lru_cache(maxsize=None)
def _has_buffered_blockspec() -> bool:
    try:
        def probe(x_ref, c_ref, o_ref):
            o_ref[...] = x_ref[...] + c_ref[...]

        out = pl.pallas_call(
            probe,
            grid=(2,),
            in_specs=[pl.BlockSpec((8, 128), lambda i: (i, 0)),
                      pl.BlockSpec((1, 128), lambda i: (0, 0),
                                   pipeline_mode=pl.Buffered(1))],
            out_specs=pl.BlockSpec((8, 128), lambda i: (i, 0)),
            out_shape=jax.ShapeDtypeStruct((16, 128), jnp.float32),
        )(jnp.ones((16, 128), jnp.float32), jnp.ones((1, 128), jnp.float32))
        out = jax.block_until_ready(out)
        return bool(jnp.all(out == 2.0))
    except Exception:
        return False


# -----------------------------------------------------------------------------
# Fused kernel factory
# -----------------------------------------------------------------------------
def _make_fused_kernel(*, p, use_dropout, use_kernel_prng, eps):
    if use_dropout:
        if use_kernel_prng:
            thr = int(p * float(1 << 32)) & ~1          # even -> exact after >> 1
            thr_half = np.uint32(thr >> 1)
            scale = np.float32(float(1 << 32) / float((1 << 32) - thr))
        else:
            thr8 = min(max(int(round(p * 256.0)), 0), 255)
            thr8_c = np.int32(thr8)
            scale8 = np.float32(256.0 / (256.0 - thr8))

    def kernel(*refs):
        if use_dropout and use_kernel_prng:
            seed_ref, x_ref, g_ref, b_ref, w_ref, bias_ref, o_ref = refs
        elif use_dropout:
            x_ref, g_ref, b_ref, w_ref, bias_ref, bits_ref, o_ref = refs
        else:
            x_ref, g_ref, b_ref, w_ref, bias_ref, o_ref = refs

        # ---- LayerNorm over the last dim (f32 on the VPU) --------------------
        xf = x_ref[...].astype(jnp.float32)
        mean = jnp.mean(xf, axis=-1, keepdims=True)
        var = jnp.mean(jnp.square(xf - mean), axis=-1, keepdims=True)
        ln = (xf - mean) * lax.rsqrt(var + eps) * g_ref[...] + b_ref[...]

        # ---- sublayer: dense layer on the MXU (bf16 in, f32 accumulate) ------
        y = jnp.dot(ln.astype(w_ref.dtype), w_ref[...],
                    preferred_element_type=jnp.float32)
        y = y + bias_ref[...]

        # ---- inverted dropout -------------------------------------------------
        if use_dropout:
            if use_kernel_prng:
                # Per-tile seed offset -> distinct mask per grid step.
                pltpu.prng_seed(seed_ref[0] + pl.program_id(0))
                bits = _as_uint32(pltpu.prng_random_bits(y.shape))
                # Compare in [0, 2^31): immune to signed-vs-unsigned lowering.
                keep = (bits >> 1) >= thr_half
                y = jnp.where(keep, y * scale, 0.0)
            else:
                keep = bits_ref[...].astype(jnp.int32) >= thr8_c
                y = jnp.where(keep, y * scale8, 0.0)

        # ---- residual add (re-read x: no f32 temp live across the MXU call) --
        o_ref[...] = (x_ref[...].astype(jnp.float32) + y).astype(o_ref.dtype)

    return kernel


def _pick_row_tile(n: int, tm_request: int):
    """Row tile (multiple of 8) that divides n when possible; else pad."""
    tm_request = max(8, min(int(tm_request), _round_up(n, 8)))
    tm_request -= tm_request % 8
    if n % 8 == 0:
        for cand in range(tm_request, 7, -8):
            if n % cand == 0:
                return cand, n                      # no padding / slicing passes
    tm = min(tm_request, _round_up(n, 8))
    return tm, _round_up(n, tm)                     # ragged fallback only


# -----------------------------------------------------------------------------
# Public wrapper
# -----------------------------------------------------------------------------
def sublayer_residual(x, gamma, beta, w, b, *, key=None, p=0.1, training=True,
                      tm=512, matmul_dtype=jnp.bfloat16, eps=1e-5):
    """x: (B, S, D).  Returns x + dropout(LayerNorm(x) @ w + b), same shape/dtype as x."""
    B, S, D = x.shape
    assert w.shape == (D, D), "residual add requires a (D, D) sublayer weight"
    assert 0.0 <= p < 1.0
    N = B * S
    x2 = x.reshape(N, D)

    use_dropout = bool(training) and p > 0.0
    if use_dropout and key is None:
        raise ValueError("a PRNG key is required when training with p > 0")
    use_kernel_prng = use_dropout and _has_kernel_prng()

    tm, n_pad = _pick_row_tile(N, tm)
    if n_pad != N:                                   # only for ragged tiny inputs
        x2 = jnp.pad(x2, ((0, n_pad - N), (0, 0)))

    gamma2 = gamma.reshape(1, D).astype(jnp.float32)
    beta2 = beta.reshape(1, D).astype(jnp.float32)
    bias2 = b.reshape(1, D).astype(jnp.float32)
    w_mx = w.astype(matmul_dtype)

    # Grid-resident operands: constant index_map; single-buffered when supported.
    resident_kw = ({"pipeline_mode": pl.Buffered(1)}
                   if _has_buffered_blockspec() else {})
    row_spec = pl.BlockSpec((tm, D), lambda i, *_: (i, 0))
    vec_spec = pl.BlockSpec((1, D), lambda i, *_: (0, 0), **resident_kw)
    w_spec = pl.BlockSpec((D, D), lambda i, *_: (0, 0), **resident_kw)

    in_specs = [row_spec, vec_spec, vec_spec, w_spec, vec_spec]
    args = [x2, gamma2, beta2, w_mx, bias2]
    prefetch_args = []
    num_scalar_prefetch = 0

    if use_dropout:
        if use_kernel_prng:
            num_scalar_prefetch = 1
            seed = jax.random.randint(key, (1,), 0, 2**31 - 1, dtype=jnp.int32)
            prefetch_args = [seed]
        else:
            # Interpreter fallback: stream uint8 thresholds (1 B/elem, not 4).
            bits = jax.random.bits(key, (n_pad, D), dtype=jnp.uint8)
            in_specs.append(pl.BlockSpec((tm, D), lambda i, *_: (i, 0)))
            args.append(bits)

    # Explicit VMEM budget: double-buffered streamed tiles + resident params +
    # f32 intermediates, 2x headroom, clamped to a v7x-safe ceiling.
    w_bufs = 1 if resident_kw else 2
    bits_bytes = 1 if (use_dropout and not use_kernel_prng) else 0
    est = (2 * tm * D * x2.dtype.itemsize            # x   (double buffered)
           + 2 * tm * D * x.dtype.itemsize           # out (double buffered)
           + 2 * tm * D * bits_bytes                 # dropout bytes (fallback only)
           + w_bufs * D * D * jnp.dtype(matmul_dtype).itemsize
           + 2 * 3 * D * 4                           # gamma / beta / bias
           + 6 * tm * D * 4)                         # f32 intermediates
    vmem_limit = int(min(max(2 * est, 32 * 1024 * 1024), 48 * 1024 * 1024))

    grid = (n_pad // tm,)
    out = pl.pallas_call(
        _make_fused_kernel(p=p, use_dropout=use_dropout,
                           use_kernel_prng=use_kernel_prng, eps=eps),
        grid_spec=pltpu.PrefetchScalarGridSpec(
            num_scalar_prefetch=num_scalar_prefetch,
            grid=grid,
            in_specs=in_specs,
            out_specs=row_spec),
        out_shape=jax.ShapeDtypeStruct((n_pad, D), x.dtype),
        compiler_params=pltpu.CompilerParams(
            dimension_semantics=("parallel",),
            vmem_limit_bytes=vmem_limit),
    )(*prefetch_args, *args)

    if n_pad != N:
        out = out[:N]
    return out.reshape(B, S, D)


if __name__ == "__main__":
    # Small deterministic shapes: batch=2, seq=8, d_model=128.
    B, S, D = 2, 8, 128
    root = jax.random.PRNGKey(0)
    kx, kw, kb, kdrop = jax.random.split(root, 4)

    x = jax.random.normal(kx, (B, S, D), dtype=jnp.float32)

    # LayerNorm parameters: torch default init (weight=1, bias=0).
    gamma = jnp.ones((D,), jnp.float32)
    beta = jnp.zeros((D,), jnp.float32)

    # Deterministic dense-sublayer parameters.
    w = jax.random.normal(kw, (D, D), dtype=jnp.float32) * (1.0 / D ** 0.5)
    b = jax.random.normal(kb, (D,), dtype=jnp.float32) * 0.01

    p = 0.1

    # Training mode (dropout active).  tm=8 forces a 2-step row grid so the
    # tiled-grid path is exercised even at this toy size (and 8 divides N=16,
    # so no pad/slice passes are emitted).
    out_train = sublayer_residual(x, gamma, beta, w, b, key=kdrop, p=p,
                                  training=True, tm=8)
    out_train = jax.block_until_ready(out_train)
    assert out_train.shape == (B, S, D) and out_train.dtype == jnp.float32
    assert bool(jnp.all(jnp.isfinite(out_train)))

    # Eval mode (dropout off) vs. a pure-JAX reference with the same
    # bf16-input / f32-accumulation matmul.
    out_eval = sublayer_residual(x, gamma, beta, w, b, p=p, training=False, tm=8)
    out_eval = jax.block_until_ready(out_eval)
    x2 = x.reshape(-1, D)
    mu = jnp.mean(x2, axis=-1, keepdims=True)
    var = jnp.mean((x2 - mu) ** 2, axis=-1, keepdims=True)
    ln_ref = (x2 - mu) * lax.rsqrt(var + 1e-5) * gamma + beta
    y_ref = jnp.dot(ln_ref.astype(jnp.bfloat16), w.astype(jnp.bfloat16),
                    preferred_element_type=jnp.float32) + b
    ref = (x2 + y_ref).reshape(B, S, D)
    err = float(jnp.max(jnp.abs(out_eval - ref)))
    assert err < 3e-2, f"max abs eval error {err}"

    # Dropped positions keep exactly the residual value x -> check drop rate.
    dropped = out_train == x
    drop_frac = float(jnp.mean(dropped.astype(jnp.float32)))
    assert 0.02 <= drop_frac <= 0.30, f"unexpected drop fraction {drop_frac}"

    # Kept positions must be the eval sublayer output scaled by ~1/(1-p).
    diff_t = out_train - x
    diff_e = out_eval - x
    kept = (~dropped) & (jnp.abs(diff_e) > 0.05)
    target = 1.0 / (1.0 - p)
    ratio = jnp.where(kept, diff_t / jnp.where(kept, diff_e, 1.0), target)
    ratio_err = float(jnp.max(jnp.abs(ratio - target)))
    assert ratio_err < 2e-2, f"kept-position scale error {ratio_err}"

    print("KERNEL_OK")
</pallas_src>

<mosaic_0001>
module attributes {stable_mosaic.version = 11 : i64} {
  func.func @probe(%arg0: i32, %arg1: memref<1xi32, #tpu.memory_space<smem>>, %arg2: memref<8x128xf32, #tpu.memory_space<vmem>>, %arg3: memref<8x128xf32, #tpu.memory_space<vmem>>) attributes {dimension_semantics = [#tpu.dimension_semantics<arbitrary>], iteration_bounds = array<i64: 1>, scalar_prefetch = 1 : i64, scratch_operands = 0 : i64, tpu.core_type = #tpu.core_type<tc>, window_params = [{pipeline_mode = #tpu.pipeline_mode<synchronous>, transform_indices = @transform_0, window_bounds = array<i64: 8, 128>}, {pipeline_mode = #tpu.pipeline_mode<synchronous>, transform_indices = @transform_1, window_bounds = array<i64: 8, 128>}]} {
    %c0 = arith.constant 0 : index
    %0 = memref.load %arg1[%c0] : memref<1xi32, #tpu.memory_space<smem>>
    %1 = arith.addi %0, %arg0 : i32
    "tpu.prng_set_seed_32"(%1) : (i32) -> ()
    %2 = "tpu.prng_random_bits"() : () -> vector<8x128xi32>
    %3 = tpu.bitcast %2 : vector<8x128xi32> -> vector<8x128xi32>
    %c0_0 = arith.constant 0 : index
    %c0_1 = arith.constant 0 : index
    %4 = vector.load %arg2[%c0_0, %c0_1] : memref<8x128xf32, #tpu.memory_space<vmem>>, vector<8x128xf32>
    %c31_i32 = arith.constant 31 : i32
    %5 = vector.broadcast %c31_i32 : i32 to vector<8x128xi32>
    %6 = arith.shrui %3, %5 : vector<8x128xi32>
    %7 = arith.uitofp %6 : vector<8x128xi32> to vector<8x128xf32>
    %8 = arith.addf %4, %7 : vector<8x128xf32>
    %c0_2 = arith.constant 0 : index
    %c0_3 = arith.constant 0 : index
    %9 = vector.load %arg3[%c0_2, %c0_3] : memref<8x128xf32, #tpu.memory_space<vmem>>, vector<8x128xf32>
    tpu.vector_store %arg3[%c0_2, %c0_3], %8 {strides = array<i32>} : memref<8x128xf32, #tpu.memory_space<vmem>>, vector<8x128xf32>,
    return
  }
  func.func @transform_0(%arg0: i32, %arg1: memref<1xi32, #tpu.memory_space<smem>>) -> (i32, i32) {
    %c0_i32 = arith.constant 0 : i32
    %c0_i32_0 = arith.constant 0 : i32
    %c0_i32_1 = arith.constant 0 : i32
    return %c0_i32, %c0_i32_0 : i32, i32
  }
  func.func @transform_1(%arg0: i32, %arg1: memref<1xi32, #tpu.memory_space<smem>>) -> (i32, i32) {
    %c0_i32 = arith.constant 0 : i32
    %c0_i32_0 = arith.constant 0 : i32
    %c0_i32_1 = arith.constant 0 : i32
    return %c0_i32, %c0_i32_0 : i32, i32
  }
}

module attributes {stable_mosaic.version = 11 : i64} {
  func.func @probe(%arg0: i32, %arg1: memref<8x128xf32, #tpu.memory_space<vmem>>, %arg2: memref<1x128xf32, #tpu.memory_space<vmem>>, %arg3: memref<8x128xf32, #tpu.memory_space<vmem>>) attributes {dimension_semantics = [#tpu.dimension_semantics<arbitrary>], iteration_bounds = array<i64: 2>, scalar_prefetch = 0 : i64, scratch_operands = 0 : i64, tpu.core_type = #tpu.core_type<tc>, window_params = [{transform_indices = @transform_0, window_bounds = array<i64: 8, 128>}, {pipeline_mode = #tpu.pipeline_mode<synchronous>, transform_indices = @transform_1, window_bounds = array<i64: 1, 128>}, {transform_indices = @transform_2, window_bounds = array<i64: 8, 128>}]} {
    %c0 = arith.constant 0 : index
    %c0_0 = arith.constant 0 : index
    %0 = vector.load %arg1[%c0, %c0_0] : memref<8x128xf32, #tpu.memory_space<vmem>>, vector<8x128xf32>
    %c0_1 = arith.constant 0 : index
    %c0_2 = arith.constant 0 : index
    %1 = vector.load %arg2[%c0_1, %c0_2] : memref<1x128xf32, #tpu.memory_space<vmem>>, vector<1x128xf32>
    %2 = vector.broadcast %1 : vector<1x128xf32> to vector<8x128xf32>
    %3 = arith.addf %0, %2 : vector<8x128xf32>
    %c0_3 = arith.constant 0 : index
    %c0_4 = arith.constant 0 : index
    %4 = vector.load %arg3[%c0_3, %c0_4] : memref<8x128xf32, #tpu.memory_space<vmem>>, vector<8x128xf32>
    tpu.vector_store %arg3[%c0_3, %c0_4], %3 {strides = array<i32>} : memref<8x128xf32, #tpu.memory_space<vmem>>, vector<8x128xf32>,
    return
  }
  func.func @transform_0(%arg0: i32) -> (i32, i32) {
    %c0_i32 = arith.constant 0 : i32
    %c0_i32_0 = arith.constant 0 : i32
    return %arg0, %c0_i32 : i32, i32
  }
  func.func @transform_1(%arg0: i32) -> (i32, i32) {
    %c0_i32 = arith.constant 0 : i32
    %c0_i32_0 = arith.constant 0 : i32
    %c0_i32_1 = arith.constant 0 : i32
    return %c0_i32, %c0_i32_0 : i32, i32
  }
  func.func @transform_2(%arg0: i32) -> (i32, i32) {
    %c0_i32 = arith.constant 0 : i32
    %c0_i32_0 = arith.constant 0 : i32
    return %arg0, %c0_i32 : i32, i32
  }
}

module attributes {stable_mosaic.version = 11 : i64} {
  func.func @kernel(%arg0: i32, %arg1: memref<8x128xf32, #tpu.memory_space<vmem>>, %arg2: memref<1x128xf32, #tpu.memory_space<vmem>>, %arg3: memref<1x128xf32, #tpu.memory_space<vmem>>, %arg4: memref<128x128xbf16, #tpu.memory_space<vmem>>, %arg5: memref<1x128xf32, #tpu.memory_space<vmem>>, %arg6: memref<8x128xi8, #tpu.memory_space<vmem>>, %arg7: memref<8x128xf32, #tpu.memory_space<vmem>>) attributes {dimension_semantics = [#tpu.dimension_semantics<parallel>], iteration_bounds = array<i64: 2>, scalar_prefetch = 0 : i64, scratch_operands = 0 : i64, tpu.core_type = #tpu.core_type<tc>, window_params = [{transform_indices = @transform_0, window_bounds = array<i64: 8, 128>}, {pipeline_mode = #tpu.pipeline_mode<synchronous>, transform_indices = @transform_1, window_bounds = array<i64: 1, 128>}, {pipeline_mode = #tpu.pipeline_mode<synchronous>, transform_indices = @transform_2, window_bounds = array<i64: 1, 128>}, {pipeline_mode = #tpu.pipeline_mode<synchronous>, transform_indices = @transform_3, window_bounds = array<i64: 128, 128>}, {pipeline_mode = #tpu.pipeline_mode<synchronous>, transform_indices = @transform_4, window_bounds = array<i64: 1, 128>}, {transform_indices = @transform_5, window_bounds = array<i64: 8, 128>}, {transform_indices = @transform_6, window_bounds = array<i64: 8, 128>}]} {
    %c0 = arith.constant 0 : index
    %c0_0 = arith.constant 0 : index
    %0 = vector.load %arg1[%c0, %c0_0] : memref<8x128xf32, #tpu.memory_space<vmem>>, vector<8x128xf32>
    %cst = arith.constant dense<0.000000e+00> : vector<8xf32>
    %1 = vector.multi_reduction <add>, %0, %cst [1] : vector<8x128xf32> to vector<8xf32>
    %2 = vector.shape_cast %1 : vector<8xf32> to vector<8x1xf32>
    %cst_1 = arith.constant 1.280000e+02 : f32
    %3 = vector.broadcast %cst_1 : f32 to vector<8x1xf32>
    %4 = arith.divf %2, %3 : vector<8x1xf32>
    %5 = vector.broadcast %4 : vector<8x1xf32> to vector<8x128xf32>
    %6 = arith.subf %0, %5 : vector<8x128xf32>
    %7 = arith.mulf %6, %6 : vector<8x128xf32>
    %cst_2 = arith.constant dense<0.000000e+00> : vector<8xf32>
    %8 = vector.multi_reduction <add>, %7, %cst_2 [1] : vector<8x128xf32> to vector<8xf32>
    %9 = vector.shape_cast %8 : vector<8xf32> to vector<8x1xf32>
    %cst_3 = arith.constant 1.280000e+02 : f32
    %10 = vector.broadcast %cst_3 : f32 to vector<8x1xf32>
    %11 = arith.divf %9, %10 : vector<8x1xf32>
    %12 = vector.broadcast %4 : vector<8x1xf32> to vector<8x128xf32>
    %13 = arith.subf %0, %12 : vector<8x128xf32>
    %cst_4 = arith.constant 9.99999974E-6 : f32
    %14 = vector.broadcast %cst_4 : f32 to vector<8x1xf32>
    %15 = arith.addf %11, %14 : vector<8x1xf32>
    %16 = math.rsqrt %15 : vector<8x1xf32>
    %17 = vector.broadcast %16 : vector<8x1xf32> to vector<8x128xf32>
    %18 = arith.mulf %13, %17 : vector<8x128xf32>
    %c0_5 = arith.constant 0 : index
    %c0_6 = arith.constant 0 : index
    %19 = vector.load %arg2[%c0_5, %c0_6] : memref<1x128xf32, #tpu.memory_space<vmem>>, vector<1x128xf32>
    %20 = vector.broadcast %19 : vector<1x128xf32> to vector<8x128xf32>
    %21 = arith.mulf %18, %20 : vector<8x128xf32>
    %c0_7 = arith.constant 0 : index
    %c0_8 = arith.constant 0 : index
    %22 = vector.load %arg3[%c0_7, %c0_8] : memref<1x128xf32, #tpu.memory_space<vmem>>, vector<1x128xf32>
    %23 = vector.broadcast %22 : vector<1x128xf32> to vector<8x128xf32>
    %24 = arith.addf %21, %23 : vector<8x128xf32>
    %25 = arith.truncf %24 : vector<8x128xf32> to vector<8x128xbf16>
    %c0_9 = arith.constant 0 : index
    %c0_10 = arith.constant 0 : index
    %26 = vector.load %arg4[%c0_9, %c0_10] : memref<128x128xbf16, #tpu.memory_space<vmem>>, vector<128x128xbf16>
    %cst_11 = arith.constant dense<0.000000e+00> : vector<8x128xf32>
    %27 = tpu.matmul %25, %26, %cst_11 {dimension_numbers = #tpu.dot_dimension_numbers<[1], [0], [0], [1], [0, 0, 1, 1], [], []>} : vector<8x128xbf16>, vector<128x128xbf16>, vector<8x128xf32> -> vector<8x128xf32>
    %c0_12 = arith.constant 0 : index
    %c0_13 = arith.constant 0 : index
    %28 = vector.load %arg5[%c0_12, %c0_13] : memref<1x128xf32, #tpu.memory_space<vmem>>, vector<1x128xf32>
    %29 = vector.broadcast %28 : vector<1x128xf32> to vector<8x128xf32>
    %30 = arith.addf %27, %29 : vector<8x128xf32>
    %c0_14 = arith.constant 0 : index
    %c0_15 = arith.constant 0 : index
    %31 = vector.load %arg6[%c0_14, %c0_15] : memref<8x128xi8, #tpu.memory_space<vmem>>, vector<8x128xi8>
    %32 = arith.extui %31 : vector<8x128xi8> to vector<8x128xi32>
    %c26_i32 = arith.constant 26 : i32
    %33 = vector.broadcast %c26_i32 : i32 to vector<8x128xi32>
    %34 = arith.cmpi sge, %32, %33 : vector<8x128xi32>
    %cst_16 = arith.constant 1.11304343 : f32
    %35 = vector.broadcast %cst_16 : f32 to vector<8x128xf32>
    %36 = arith.mulf %30, %35 : vector<8x128xf32>
    %cst_17 = arith.constant 0.000000e+00 : f32
    %37 = vector.broadcast %cst_17 : f32 to vector<8x128xf32>
    %38 = arith.select %34, %36, %37 : vector<8x128xi1>, vector<8x128xf32>
    %c0_18 = arith.constant 0 : index
    %c0_19 = arith.constant 0 : index
    %39 = vector.load %arg1[%c0_18, %c0_19] : memref<8x128xf32, #tpu.memory_space<vmem>>, vector<8x128xf32>
    %40 = arith.addf %39, %38 : vector<8x128xf32>
    %c0_20 = arith.constant 0 : index
    %c0_21 = arith.constant 0 : index
    %41 = vector.load %arg7[%c0_20, %c0_21] : memref<8x128xf32, #tpu.memory_space<vmem>>, vector<8x128xf32>
    tpu.vector_store %arg7[%c0_20, %c0_21], %40 {strides = array<i32>} : memref<8x128xf32, #tpu.memory_space<vmem>>, vector<8x128xf32>,
    return
  }
  func.func @transform_0(%arg0: i32) -> (i32, i32) {
    %c0_i32 = arith.constant 0 : i32
    %c0_i32_0 = arith.constant 0 : i32
    return %arg0, %c0_i32 : i32, i32
  }
  func.func @transform_1(%arg0: i32) -> (i32, i32) {
    %c0_i32 = arith.constant 0 : i32
    %c0_i32_0 = arith.constant 0 : i32
    %c0_i32_1 = arith.constant 0 : i32
    return %c0_i32, %c0_i32_0 : i32, i32
  }
  func.func @transform_2(%arg0: i32) -> (i32, i32) {
    %c0_i32 = arith.constant 0 : i32
    %c0_i32_0 = arith.constant 0 : i32
    %c0_i32_1 = arith.constant 0 : i32
    return %c0_i32, %c0_i32_0 : i32, i32
  }
  func.func @transform_3(%arg0: i32) -> (i32, i32) {
    %c0_i32 = arith.constant 0 : i32
    %c0_i32_0 = arith.constant 0 : i32
    %c0_i32_1 = arith.constant 0 : i32
    return %c0_i32, %c0_i32_0 : i32, i32
  }
  func.func @transform_4(%arg0: i32) -> (i32, i32) {
    %c0_i32 = arith.constant 0 : i32
    %c0_i32_0 = arith.constant 0 : i32
    %c0_i32_1 = arith.constant 0 : i32
    return %c0_i32, %c0_i32_0 : i32, i32
  }
  func.func @transform_5(%arg0: i32) -> (i32, i32) {
    %c0_i32 = arith.constant 0 : i32
    %c0_i32_0 = arith.constant 0 : i32
    return %arg0, %c0_i32 : i32, i32
  }
  func.func @transform_6(%arg0: i32) -> (i32, i32) {
    %c0_i32 = arith.constant 0 : i32
    %c0_i32_0 = arith.constant 0 : i32
    return %arg0, %c0_i32 : i32, i32
  }
}

</mosaic_0001>

<llo_original>
// kernel: tpu_custom_call.1
$region0: #{tpu_custom_call.1}
  #allocation0 [shape = 'u32[]', space=smem, size = 0x4, offset = 0x4, fixed_abs, tag = 'smem constant byte address 0x4 - core index']
  #allocation1 [shape = 'u32[72,128]{1,0:T(1,128)}', space=vmem, size = 0x9000, scoped, tag = 'internal scratch']
  #allocation2 [shape = 's32[1]{0}', space=sflag, size = 0x4, scoped, tag = 'scoped memory for tpu_custom_call.1']
  #allocation3 [shape = 's32[1]{0:T(128)S(6)}', space=smem, size = 0x200, scoped, tag = 'prefetched SMEM operand 0']
  %s0 = inlined_call_operand.<no memory space> [shape: s32[1], index: 0, kind: input, shape index: {}]
  %s1 = inlined_call_operand.hbm [shape: f32[8,128], index: 1, kind: input, shape index: {}]
  %s2 = inlined_call_operand.hbm [shape: f32[8,128], index: 2, kind: output, shape index: {}]
  %s3 = sld [smem:[#allocation0]]
  $region18: #{tpu_custom_call.1} parent=0
    _
  %s5 = ssub.s32 1, %s3
  %s6 = scalar_select 0, %s5, %s3
  %7 = sst [smem:[#allocation3]] %s0
  $region1: #{tpu_custom_call.1} parent=0
    #allocation4 [shape = 'u8[4096]{0}', space=vmem, size = 0x1000, scoped, tag = 'input window, operand 1, single buffered']
    #allocation5 [shape = 's32[1]{0}', space=sflag, size = 0x4, scoped, tag = 'scoped memory for tpu_custom_call.1']
    #allocation6 [shape = 's32[1]{0}', space=sflag, size = 0x4, scoped, tag = 'scoped memory for tpu_custom_call.1']
    #allocation7 [shape = 'u8[4096]{0}', space=vmem, size = 0x1000, scoped, tag = 'output window, operand 0, single buffered']
    %8 = vsyncpa [#allocation5], 0
    %9 = vsyncpa [#allocation6], 0
    // Predicated region
    $region2: #{tpu_custom_call.1} parent=1 // pred_check
      _
    $region3: #{tpu_custom_call.1} parent=1 // pred_check_branch
      %11 = sbr.rel (0) target = $region5
    $region4: #{tpu_custom_call.1} parent=1 // pred_region
      %13 = vsyncadd [#allocation5], 0
      %s15 = sshll.u32 %s1, 4
      %s16 = int_to_ptr.hbm [resolvable:$true] %s15
      %s17 = sshll.u32 [#allocation4], 4
      %s18 = int_to_ptr.vmem [resolvable:$true] %s17
      %20 = dma.hbm_to_vmem [thread:$0]  %s16, 128, %s18, [#allocation5]
    $region5: #{tpu_custom_call.1} parent=1 // pred_fallthru
      _
    // Predicated region
    $region6: #{tpu_custom_call.1} parent=1 // pred_check
      _
    $region7: #{tpu_custom_call.1} parent=1 // pred_check_branch
      %22 = sbr.rel (0) target = $region9
    $region8: #{tpu_custom_call.1} parent=1 // pred_region
      %24 = dma.done [#allocation5], 128
    $region9: #{tpu_custom_call.1} parent=1 // pred_fallthru
      _
    %s25 = sld [smem:[#allocation3]]
    %s26 = sadd.s32 %s25, 0
    %v27 = vlaneseq
    %v28 = vstv %s26
    %v29 = vxor.u32 %v28, %v28
    %v30 = vxor.u32 %v29, 466688986
    %v31 = vadd.s32 %v27, %v28
    %v32 = vadd.s32 %v31, %v31
    %v33 = vshll.u32 %v31, 13
    %v34 = vshrl.u32 %v31, 19
    %v35 = vor.u32 %v33, %v34
    %v36 = vxor.u32 %v32, %v35
    %v37 = vadd.s32 %v32, %v36
    %v38 = vshll.u32 %v36, 15
    %v39 = vshrl.u32 %v36, 17
    %v40 = vor.u32 %v38, %v39
    %v41 = vxor.u32 %v37, %v40
    %v42 = vadd.s32 %v37, %v41
    %v43 = vshll.u32 %v41, 26
    %v44 = vshrl.u32 %v41, 6
    %v45 = vor.u32 %v43, %v44
    %v46 = vxor.u32 %v42, %v45
    %v47 = vadd.s32 %v42, %v46
    %v48 = vshll.u32 %v46, 6
    %v49 = vshrl.u32 %v46, 26
    %v50 = vor.u32 %v48, %v49
    %v51 = vxor.u32 %v47, %v50
    %v52 = vadd.s32 %v47, %v28
    %v53 = vadd.s32 %v51, %v30
    %v54 = vadd.s32 %v53, 1
    %v55 = vadd.s32 %v52, %v54
    %v56 = vshll.u32 %v54, 17
    %v57 = vshrl.u32 %v54, 15
    %v58 = vor.u32 %v56, %v57
    %v59 = vxor.u32 %v55, %v58
    %v60 = vadd.s32 %v55, %v59
    %v61 = vshll.u32 %v59, 29
    %v62 = vshrl.u32 %v59, 3
    %v63 = vor.u32 %v61, %v62
    %v64 = vxor.u32 %v60, %v63
    %v65 = vadd.s32 %v60, %v64
    %v66 = vshll.u32 %v64, 16
    %v67 = vshrl.u32 %v64, 16
    %v68 = vor.u32 %v66, %v67
    %v69 = vxor.u32 %v65, %v68
    %v70 = vadd.s32 %v65, %v69
    %v71 = vshll.u32 %v69, 24
    %v72 = vshrl.u32 %v69, 8
    %v73 = vor.u32 %v71, %v72
    %v74 = vxor.u32 %v70, %v73
    %v75 = vadd.s32 %v70, %v30
    %v76 = vadd.s32 %v74, %v28
    %v77 = vadd.s32 %v76, 2
    %v78 = vadd.s32 %v75, %v77
    %v79 = vshll.u32 %v77, 13
    %v80 = vshrl.u32 %v77, 19
    %v81 = vor.u32 %v79, %v80
    %v82 = vxor.u32 %v78, %v81
    %v83 = vadd.s32 %v78, %v82
    %v84 = vshll.u32 %v82, 15
    %v85 = vshrl.u32 %v82, 17
    %v86 = vor.u32 %v84, %v85
    %v87 = vxor.u32 %v83, %v86
    %v88 = vadd.s32 %v83, %v87
    %v89 = vshll.u32 %v87, 26
    %v90 = vshrl.u32 %v87, 6
    %v91 = vor.u32 %v89, %v90
    %v92 = vxor.u32 %v88, %v91
    %v93 = vadd.s32 %v88, %v92
    %v94 = vshll.u32 %v92, 6
    %v95 = vshrl.u32 %v92, 26
    %v96 = vor.u32 %v94, %v95
    %v97 = vxor.u32 %v93, %v96
    %v98 = vadd.s32 %v93, %v28
    %v99 = vadd.s32 %v97, %v28
    %v100 = vadd.s32 %v99, 3
    %v101 = vadd.s32 %v98, %v100
    %v102 = vshll.u32 %v100, 17
    %v103 = vshrl.u32 %v100, 15
    %v104 = vor.u32 %v102, %v103
    %v105 = vxor.u32 %v101, %v104
    %v106 = vadd.s32 %v101, %v105
    %v107 = vshll.u32 %v105, 29
    %v108 = vshrl.u32 %v105, 3
    %v109 = vor.u32 %v107, %v108
    %v110 = vxor.u32 %v106, %v109
    %v111 = vadd.s32 %v106, %v110
    %v112 = vshll.u32 %v110, 16
    %v113 = vshrl.u32 %v110, 16
    %v114 = vor.u32 %v112, %v113
    %v115 = vxor.u32 %v111, %v114
    %v116 = vadd.s32 %v111, %v115
    %v117 = vshll.u32 %v115, 24
    %v118 = vshrl.u32 %v115, 8
    %v119 = vor.u32 %v117, %v118
    %v120 = vxor.u32 %v116, %v119
    %v121 = vadd.s32 %v116, %v28
    %v122 = vadd.s32 %v120, %v30
    %v123 = vadd.s32 %v122, 4
    %v124 = vadd.s32 %v121, %v123
    %v125 = vshll.u32 %v123, 13
    %v126 = vshrl.u32 %v123, 19
    %v127 = vor.u32 %v125, %v126
    %v128 = vxor.u32 %v124, %v127
    %v129 = vadd.s32 %v124, %v128
    %v130 = vshll.u32 %v128, 15
    %v131 = vshrl.u32 %v128, 17
    %v132 = vor.u32 %v130, %v131
    %v133 = vxor.u32 %v129, %v132
    %v134 = vadd.s32 %v129, %v133
    %v135 = vshll.u32 %v133, 26
    %v136 = vshrl.u32 %v133, 6
    %v137 = vor.u32 %v135, %v136
    %v138 = vxor.u32 %v134, %v137
    %v139 = vadd.s32 %v134, %v138
    %v140 = vshll.u32 %v138, 6
    %v141 = vshrl.u32 %v138, 26
    %v142 = vor.u32 %v140, %v141
    %v143 = vxor.u32 %v139, %v142
    %v144 = vadd.s32 %v139, %v30
    %v145 = vadd.s32 %v143, %v28
    %v146 = vadd.s32 %v145, 5
    %v147 = vxor.u32 %v144, %v146
    %148 = set.rngseed %v147
    %v149 = vrng
    %v150 = vld [vmem:[#allocation4] sm:$0xff]
    %v151 = vshrl.u32 %v149, 31
    %v152 = vshrl.u32 %v151, 16
    %v153 = vand.u32 %v151, 65535
    %v154 = vcvt.s32.f32 %v152
    %v155 = vmul.f32 %v154, 65536.0
    %v156 = vcvt.s32.f32 %v153
    %v157 = vadd.f32 %v155, %v156
    %v158 = vadd.f32 %v150, %v157
    %159 = vst [vmem:[#allocation7] sm:$0xff] %v158
    // Predicated region
    $region10: #{tpu_custom_call.1} parent=1 // pred_check
      _
    $region11: #{tpu_custom_call.1} parent=1 // pred_check_branch
      %161 = sbr.rel (0) target = $region13
    $region12: #{tpu_custom_call.1} parent=1 // pred_region
      %163 = vsyncadd [#allocation6], 0
      %s165 = sshll.u32 [#allocation7], 4
      %s166 = int_to_ptr.vmem [resolvable:$true] %s165
      %s167 = sshll.u32 %s2, 4
      %s168 = int_to_ptr.hbm [resolvable:$true] %s167
      %170 = dma.vmem_to_hbm [thread:$0]  %s166, 128, %s168, [#allocation6]
    $region13: #{tpu_custom_call.1} parent=1 // pred_fallthru
      _
    // Predicated region
    $region14: #{tpu_custom_call.1} parent=1 // pred_check
      _
    $region15: #{tpu_custom_call.1} parent=1 // pred_check_branch
      %172 = sbr.rel (0) target = $region17
    $region16: #{tpu_custom_call.1} parent=1 // pred_region
      %174 = dma.done [#allocation6], 128
    $region17: #{tpu_custom_call.1} parent=1 // pred_fallthru
      _
    %175 = vsyncpa [#allocation5], 1
    %176 = vsyncpa [#allocation6], 1

// kernel: tpu_custom_call.1
$region0: #{tpu_custom_call.1}
  #allocation0 [shape = 'u32[]', space=smem, size = 0x4, offset = 0x4, fixed_abs, tag = 'smem constant byte address 0x4 - core index']
  #allocation1 [shape = 'u32[72,128]{1,0:T(1,128)}', space=vmem, size = 0x9000, scoped, tag = 'internal scratch']
  %s0 = inlined_call_operand.hbm [shape: f32[16,128], index: 0, kind: input, shape index: {}]
  %s1 = inlined_call_operand.hbm [shape: f32[1,128], index: 1, kind: input, shape index: {}]
  %s2 = inlined_call_operand.hbm [shape: f32[16,128], index: 2, kind: output, shape index: {}]
  %s3 = sld [smem:[#allocation0]]
  $region49: #{tpu_custom_call.1} parent=0
    _
  %s5 = ssub.s32 1, %s3
  %s6 = scalar_select 0, %s5, %s3
  $region1: #{tpu_custom_call.1} parent=0
    #allocation2 [shape = 'u8[8192]{0}', space=vmem, size = 0x2000, scoped, tag = 'input window, operand 0']
    #allocation3 [shape = 's32[2]{0}', space=sflag, size = 0x8, scoped, tag = 'scoped memory for tpu_custom_call.1']
    #allocation4 [shape = 's32[2]{0}', space=sflag, size = 0x8, scoped, tag = 'scoped memory for tpu_custom_call.1']
    #allocation5 [shape = 'u8[512]{0}', space=vmem, size = 0x400, scoped, tag = 'input window, operand 1, single buffered']
    #allocation6 [shape = 's32[1]{0}', space=sflag, size = 0x4, scoped, tag = 'scoped memory for tpu_custom_call.1']
    #allocation7 [shape = 'u8[8192]{0}', space=vmem, size = 0x2000, scoped, tag = 'output window, operand 0']
    %7 = vsyncpa [#allocation3], 0
    %s8 = scalar_lea.sflag [#allocation3], 1
    %9 = vsyncpa %s8, 0
    %10 = vsyncpa [#allocation6], 0
    %11 = vsyncpa [#allocation4], 0
    %s12 = scalar_lea.sflag [#allocation4], 1
    %13 = vsyncpa %s12, 0
    loop: start=0, step=1, limit=4
    $region2: #{tpu_custom_call.1} parent=1 // loop_pre_header
      _
    $region3: #{tpu_custom_call.1} parent=1 // loop_header
      %s15 = sphi 0, %s19
      %p16 = scmp.ge.s32.totalorder %s15, 4
      %s25 = sphi 0, %s27
      %s28 = sphi 0, %s25
      %s29 = sphi 0, %s28
      %s45 = sphi 0, %s29
      %s49 = sphi 0, %s49
      %s51 = sphi 0, %s49
      %s52 = sphi 0, %s51
      %s66 = sphi 0, %s52
      %s72 = sphi 0, %s74
      %s75 = sphi 0, %s72
      %s76 = sphi 0, %s75
      %s92 = sphi 0, %s76
    $region4: #{tpu_custom_call.1} parent=1 // loop_header_branch
      %18 = sbr.rel (%p16) target = $region8
    $region5: #{tpu_custom_call.1} parent=1 // loop_body
      %s20 = ssub.s32 %s15, 1
      %s21 = ssub.s32 %s15, 2
      %s22 = sadd.s32 %s15, 1
      %s23 = ssub.s32 %s15, %s22
      %p24 = scmp.eq.s32.totalorder %s23, 0
      %s26 = sadd.s32 %s25, 1
      %s27 = scalar_select %p24, %s25, %s26
      %p30 = pneg %p24
      %p31 = scmp.eq.s32.totalorder %s15, 1
      %p32 = por %p30, %p31
      %p33 = scmp.ne.s32.totalorder %s25, %s28
      %p34 = scmp.eq.s32.totalorder %s15, 0
      %p35 = por %p33, %p34
      %p36 = scmp.ne.s32.totalorder %s25, %s28
      %p37 = scmp.eq.s32.totalorder %s20, 1
      %p38 = por %p36, %p37
      %p39 = scmp.ne.s32.totalorder %s28, %s29
      %p40 = scmp.eq.s32.totalorder %s20, 0
      %p41 = por %p39, %p40
      %p42 = scmp.ne.s32.totalorder %s28, %s29
      %p43 = scmp.eq.s32.totalorder %s21, 1
      %p44 = por %p42, %p43
      %p46 = scmp.ne.s32.totalorder %s29, %s45
      %p47 = scmp.eq.s32.totalorder %s21, 0
      %p48 = por %p46, %p47
      %s50 = sadd.s32 %s49, 1
      %p53 = scmp.eq.s32.totalorder %s15, 1
      %p54 = scmp.ne.s32.totalorder %s49, %s51
      %p55 = scmp.eq.s32.totalorder %s15, 0
      %p56 = por %p54, %p55
      %p57 = scmp.ne.s32.totalorder %s49, %s51
      %p58 = scmp.eq.s32.totalorder %s20, 1
      %p59 = por %p57, %p58
      %p60 = scmp.ne.s32.totalorder %s51, %s52
      %p61 = scmp.eq.s32.totalorder %s20, 0
      %p62 = por %p60, %p61
      %p63 = scmp.ne.s32.totalorder %s51, %s52
      %p64 = scmp.eq.s32.totalorder %s21, 1
      %p65 = por %p63, %p64
      %p67 = scmp.ne.s32.totalorder %s52, %s66
      %p68 = scmp.eq.s32.totalorder %s21, 0
      %p69 = por %p67, %p68
      %s70 = ssub.s32 %s15, %s22
      %p71 = scmp.eq.s32.totalorder %s70, 0
      %s73 = sadd.s32 %s72, 1
      %s74 = scalar_select %p71, %s72, %s73
      %p77 = pneg %p71
      %p78 = scmp.eq.s32.totalorder %s15, 1
      %p79 = por %p77, %p78
      %p80 = scmp.ne.s32.totalorder %s72, %s75
      %p81 = scmp.eq.s32.totalorder %s15, 0
      %p82 = por %p80, %p81
      %p83 = scmp.ne.s32.totalorder %s72, %s75
      %p84 = scmp.eq.s32.totalorder %s20, 1
      %p85 = por %p83, %p84
      %p86 = scmp.ne.s32.totalorder %s75, %s76
      %p87 = scmp.eq.s32.totalorder %s20, 0
      %p88 = por %p86, %p87
      %p89 = scmp.ne.s32.totalorder %s75, %s76
      %p90 = scmp.eq.s32.totalorder %s21, 1
      %p91 = por %p89, %p90
      %p93 = scmp.ne.s32.totalorder %s76, %s92
      %p94 = scmp.eq.s32.totalorder %s21, 0
      %p95 = por %p93, %p94
      %p96 = scmp.le.s32.totalorder 1, %s15
      %p97 = scmp.lt.s32.totalorder %s15, 3
      %p98 = pnand %p96, %p97
      %p99 = pneg %p98
      // Predicated region
      $region9: #{tpu_custom_call.1} parent=5 // pred_check
        _
      $region10: #{tpu_custom_call.1} parent=5 // pred_check_branch
        %101 = sbr.rel (%p98) target = $region12
      $region11: #{tpu_custom_call.1} parent=5 // pred_region
        %s102 = ssub.s32 %s15, 1
        // Predicated region
        $region13: #{tpu_custom_call.1} parent=11 // pred_check
          %p103 = pneg %p62
        $region14: #{tpu_custom_call.1} parent=11 // pred_check_branch
          %105 = sbr.rel (%p103) target = $region16
        $region15: #{tpu_custom_call.1} parent=11 // pred_region
          %107 = vsyncadd [#allocation6], 0
          %s109 = sshll.u32 %s1, 4
          %s110 = int_to_ptr.hbm [resolvable:$true] %s109
          %s111 = sshll.u32 [#allocation5], 4
          %s112 = int_to_ptr.vmem [resolvable:$true] %s111
          %114 = dma.hbm_to_vmem [thread:$0]  %s110, 16, %s112, [#allocation6]
        $region16: #{tpu_custom_call.1} parent=11 // pred_fallthru
          _
      $region12: #{tpu_custom_call.1} parent=5 // pred_fallthru
        _
      %p115 = scmp.lt.s32.totalorder %s15, 2
      // Predicated region
      $region17: #{tpu_custom_call.1} parent=5 // pred_check
        %p116 = pneg %p115
      $region18: #{tpu_custom_call.1} parent=5 // pred_check_branch
        %118 = sbr.rel (%p116) target = $region20
      $region19: #{tpu_custom_call.1} parent=5 // pred_region
        // Predicated region
        $region21: #{tpu_custom_call.1} parent=19 // pred_check
          %p119 = pneg %p35
        $region22: #{tpu_custom_call.1} parent=19 // pred_check_branch
          %121 = sbr.rel (%p119) target = $region24
        $region23: #{tpu_custom_call.1} parent=19 // pred_region
          %s122 = sand.u32 %s25, 1
          %s123 = scalar_lea.sflag [#allocation3], %s122
          %s124 = sand.u32 %s25, 1
          %s125 = smul.addr %s124, 8
          %s126 = scalar_lea.vmem [#allocation2], %s125
          %128 = vsyncadd %s123, 0
          %s129 = smul.addr %s15, 8
          %s130 = scalar_lea.hbm %s0, %s129
          %s132 = sshll.u32 %s130, 4
          %s133 = int_to_ptr.hbm [resolvable:$true] %s132
          %s134 = sshll.u32 %s126, 4
          %s135 = int_to_ptr.vmem [resolvable:$true] %s134
          %137 = dma.hbm_to_vmem [thread:$0]  %s133, 128, %s135, %s123
        $region24: #{tpu_custom_call.1} parent=19 // pred_fallthru
          _
      $region20: #{tpu_custom_call.1} parent=5 // pred_fallthru
        _
      %p138 = scmp.le.s32.totalorder 1, %s15
      %p139 = scmp.lt.s32.totalorder %s15, 3
      %p140 = pnand %p138, %p139
      %p141 = pneg %p140
      // Predicated region
      $region25: #{tpu_custom_call.1} parent=5 // pred_check
        _
      $region26: #{tpu_custom_call.1} parent=5 // pred_check_branch
        %143 = sbr.rel (%p140) target = $region28
      $region27: #{tpu_custom_call.1} parent=5 // pred_region
        %s144 = ssub.s32 %s15, 1
        %s145 = sand.u32 %s28, 1
        %s146 = scalar_lea.sflag [#allocation3], %s145
        %s147 = sand.u32 %s28, 1
        %s148 = smul.addr %s147, 8
        %s149 = scalar_lea.vmem [#allocation2], %s148
        // Predicated region
        $region29: #{tpu_custom_call.1} parent=27 // pred_check
          %p150 = pneg %p41
        $region30: #{tpu_custom_call.1} parent=27 // pred_check_branch
          %152 = sbr.rel (%p150) target = $region32
        $region31: #{tpu_custom_call.1} parent=27 // pred_region
          %154 = dma.done %s146, 128
        $region32: #{tpu_custom_call.1} parent=27 // pred_fallthru
          _
        // Predicated region
        $region33: #{tpu_custom_call.1} parent=27 // pred_check
          %p155 = pneg %p62
        $region34: #{tpu_custom_call.1} parent=27 // pred_check_branch
          %157 = sbr.rel (%p155) target = $region36
        $region35: #{tpu_custom_call.1} parent=27 // pred_region
          %159 = dma.done [#allocation6], 16
        $region36: #{tpu_custom_call.1} parent=27 // pred_fallthru
          _
        %s160 = sand.u32 %s28, 1
        %s161 = scalar_lea.sflag [#allocation3], %s160
        %s162 = sand.u32 %s28, 1
        %s163 = smul.addr %s162, 8
        %s164 = scalar_lea.vmem [#allocation2], %s163
        %p165 = pneg %p41
        %p166 = pneg %p38
        %p167 = pneg %p62
        %p168 = pneg %p59
        %p169 = pneg %p88
        %p170 = pneg %p85
        %s171 = sand.u32 %s75, 1
        %s172 = scalar_lea.sflag [#allocation4], %s171
        %s173 = sand.u32 %s75, 1
        %s174 = smul.addr %s173, 8
        %s175 = scalar_lea.vmem [#allocation7], %s174
        %v176 = vld [vmem:[%s149] sm:$0xff]
        %v177 = vld [vmem:[#allocation5] sm:$0x1]
        %v179 = vperm.slane %v177, 0
        %v181 = vadd.f32 %v176, %v179
        %182 = vst [vmem:[%s175] sm:$0xff] %v181
        %s183 = sand.u32 %s75, 1
        %s184 = scalar_lea.sflag [#allocation4], %s183
        %s185 = sand.u32 %s75, 1
        %s186 = smul.addr %s185, 8
        %s187 = scalar_lea.vmem [#allocation7], %s186
        // Predicated region
        $region37: #{tpu_custom_call.1} parent=27 // pred_check
          %p188 = pneg %p85
        $region38: #{tpu_custom_call.1} parent=27 // pred_check_branch
          %190 = sbr.rel (%p188) target = $region40
        $region39: #{tpu_custom_call.1} parent=27 // pred_region
          %192 = vsyncadd %s184, 0
          %s193 = smul.addr %s20, 8
          %s194 = scalar_lea.hbm %s2, %s193
          %s196 = sshll.u32 %s187, 4
          %s197 = int_to_ptr.vmem [resolvable:$true] %s196
          %s198 = sshll.u32 %s194, 4
          %s199 = int_to_ptr.hbm [resolvable:$true] %s198
          %201 = dma.vmem_to_hbm [thread:$0]  %s197, 128, %s199, %s184
        $region40: #{tpu_custom_call.1} parent=27 // pred_fallthru
          _
      $region28: #{tpu_custom_call.1} parent=5 // pred_fallthru
        _
      %p202 = scmp.le.s32.totalorder 2, %s15
      // Predicated region
      $region41: #{tpu_custom_call.1} parent=5 // pred_check
        %p203 = pneg %p202
      $region42: #{tpu_custom_call.1} parent=5 // pred_check_branch
        %205 = sbr.rel (%p203) target = $region44
      $region43: #{tpu_custom_call.1} parent=5 // pred_region
        %s206 = ssub.s32 %s15, 2
        // Predicated region
        $region45: #{tpu_custom_call.1} parent=43 // pred_check
          %p207 = pneg %p91
        $region46: #{tpu_custom_call.1} parent=43 // pred_check_branch
          %209 = sbr.rel (%p207) target = $region48
        $region47: #{tpu_custom_call.1} parent=43 // pred_region
          %s210 = sand.u32 %s76, 1
          %s211 = scalar_lea.sflag [#allocation4], %s210
          %s212 = sand.u32 %s76, 1
          %s213 = smul.addr %s212, 8
          %s214 = scalar_lea.vmem [#allocation7], %s213
          %216 = dma.done %s211, 128
        $region48: #{tpu_custom_call.1} parent=43 // pred_fallthru
          _
      $region44: #{tpu_custom_call.1} parent=5 // pred_fallthru
        _
    $region6: #{tpu_custom_call.1} parent=1 // loop_footer
      %s19 = sadd.s32 1, %s15
    $region7: #{tpu_custom_call.1} parent=1 // loop_footer_branch
      %14 = sbr.rel target = $region3
    $region8: #{tpu_custom_call.1} parent=1 // loop_exit
      _
    %217 = vsyncpa [#allocation3], 1
    %s218 = scalar_lea.sflag [#allocation3], 1
    %219 = vsyncpa %s218, 1
    %220 = vsyncpa [#allocation6], 1
    %221 = vsyncpa [#allocation4], 1
    %s222 = scalar_lea.sflag [#allocation4], 1
    %223 = vsyncpa %s222, 1

// kernel: tpu_custom_call.1
$region0: #{tpu_custom_call.1}
  #allocation0 [shape = 'u32[]', space=smem, size = 0x4, offset = 0x4, fixed_abs, tag = 'smem constant byte address 0x4 - core index']
  #allocation1 [shape = 'u32[72,128]{1,0:T(1,128)}', space=vmem, size = 0x9000, scoped, tag = 'internal scratch']
  %s0 = inlined_call_operand.hbm [shape: f32[16,128], index: 0, kind: input, shape index: {}]
  %s1 = inlined_call_operand.hbm [shape: f32[1,128], index: 1, kind: input, shape index: {}]
  %s2 = inlined_call_operand.hbm [shape: f32[1,128], index: 2, kind: input, shape index: {}]
  %s3 = inlined_call_operand.hbm [shape: bf16[128,128], index: 3, kind: input, shape index: {}]
  %s4 = inlined_call_operand.hbm [shape: f32[1,128], index: 4, kind: input, shape index: {}]
  %s5 = inlined_call_operand.vmem [shape: u8[16,128], index: 5, kind: input, shape index: {}]
  %s6 = inlined_call_operand.hbm [shape: f32[16,128], index: 6, kind: output, shape index: {}]
  %s7 = sld [smem:[#allocation0]]
  $region77: #{tpu_custom_call.1} parent=0
    _
  %s9 = ssub.s32 1, %s7
  %s10 = scalar_select 0, %s9, %s7
  $region1: #{tpu_custom_call.1} parent=0
    #allocation2 [shape = 'u8[8192]{0}', space=vmem, size = 0x2000, scoped, tag = 'input window, operand 0']
    #allocation3 [shape = 's32[2]{0}', space=sflag, size = 0x8, scoped, tag = 'scoped memory for tpu_custom_call.1']
    #allocation4 [shape = 's32[2]{0}', space=sflag, size = 0x8, scoped, tag = 'scoped memory for tpu_custom_call.1']
    #allocation5 [shape = 'u8[512]{0}', space=vmem, size = 0x400, scoped, tag = 'input window, operand 1, single buffered']
    #allocation6 [shape = 's32[1]{0}', space=sflag, size = 0x4, scoped, tag = 'scoped memory for tpu_custom_call.1']
    #allocation7 [shape = 'u8[512]{0}', space=vmem, size = 0x400, scoped, tag = 'input window, operand 2, single buffered']
    #allocation8 [shape = 'u8[32768]{0}', space=vmem, size = 0x8000, scoped, tag = 'input window, operand 3, single buffered']
    #allocation9 [shape = 's32[1]{0}', space=sflag, size = 0x4, scoped, tag = 'scoped memory for tpu_custom_call.1']
    #allocation10 [shape = 'u8[512]{0}', space=vmem, size = 0x400, scoped, tag = 'input window, operand 4, single buffered']
    #allocation11 [shape = 'u8[8192]{0}', space=vmem, size = 0x2000, scoped, tag = 'output window, operand 0']
    %11 = vsyncpa [#allocation3], 0
    %s12 = scalar_lea.sflag [#allocation3], 1
    %13 = vsyncpa %s12, 0
    %14 = vsyncpa [#allocation6], 0
    %15 = vsyncpa [#allocation9], 0
    %16 = vsyncpa [#allocation4], 0
    %s17 = scalar_lea.sflag [#allocation4], 1
    %18 = vsyncpa %s17, 0
    loop: start=0, step=1, limit=4
    $region2: #{tpu_custom_call.1} parent=1 // loop_pre_header
      _
    $region3: #{tpu_custom_call.1} parent=1 // loop_header
      %s20 = sphi 0, %s24
      %p21 = scmp.ge.s32.totalorder %s20, 4
      %s30 = sphi 0, %s32
      %s33 = sphi 0, %s30
      %s34 = sphi 0, %s33
      %s50 = sphi 0, %s34
      %s54 = sphi 0, %s54
      %s56 = sphi 0, %s54
      %s57 = sphi 0, %s56
      %s71 = sphi 0, %s57
      %s75 = sphi 0, %s75
      %s77 = sphi 0, %s75
      %s78 = sphi 0, %s77
      %s92 = sphi 0, %s78
      %s96 = sphi 0, %s96
      %s98 = sphi 0, %s96
      %s99 = sphi 0, %s98
      %s113 = sphi 0, %s99
      %s117 = sphi 0, %s117
      %s119 = sphi 0, %s117
      %s120 = sphi 0, %s119
      %s134 = sphi 0, %s120
      %s140 = sphi 0, %s142
      %s143 = sphi 0, %s140
      %s144 = sphi 0, %s143
      %s160 = sphi 0, %s144
      %s166 = sphi 0, %s168
      %s169 = sphi 0, %s166
      %s170 = sphi 0, %s169
      %s186 = sphi 0, %s170
    $region4: #{tpu_custom_call.1} parent=1 // loop_header_branch
      %23 = sbr.rel (%p21) target = $region8
    $region5: #{tpu_custom_call.1} parent=1 // loop_body
      %s25 = ssub.s32 %s20, 1
      %s26 = ssub.s32 %s20, 2
      %s27 = sadd.s32 %s20, 1
      %s28 = ssub.s32 %s20, %s27
      %p29 = scmp.eq.s32.totalorder %s28, 0
      %s31 = sadd.s32 %s30, 1
      %s32 = scalar_select %p29, %s30, %s31
      %p35 = pneg %p29
      %p36 = scmp.eq.s32.totalorder %s20, 1
      %p37 = por %p35, %p36
      %p38 = scmp.ne.s32.totalorder %s30, %s33
      %p39 = scmp.eq.s32.totalorder %s20, 0
      %p40 = por %p38, %p39
      %p41 = scmp.ne.s32.totalorder %s30, %s33
      %p42 = scmp.eq.s32.totalorder %s25, 1
      %p43 = por %p41, %p42
      %p44 = scmp.ne.s32.totalorder %s33, %s34
      %p45 = scmp.eq.s32.totalorder %s25, 0
      %p46 = por %p44, %p45
      %p47 = scmp.ne.s32.totalorder %s33, %s34
      %p48 = scmp.eq.s32.totalorder %s26, 1
      %p49 = por %p47, %p48
      %p51 = scmp.ne.s32.totalorder %s34, %s50
      %p52 = scmp.eq.s32.totalorder %s26, 0
      %p53 = por %p51, %p52
      %s55 = sadd.s32 %s54, 1
      %p58 = scmp.eq.s32.totalorder %s20, 1
      %p59 = scmp.ne.s32.totalorder %s54, %s56
      %p60 = scmp.eq.s32.totalorder %s20, 0
      %p61 = por %p59, %p60
      %p62 = scmp.ne.s32.totalorder %s54, %s56
      %p63 = scmp.eq.s32.totalorder %s25, 1
      %p64 = por %p62, %p63
      %p65 = scmp.ne.s32.totalorder %s56, %s57
      %p66 = scmp.eq.s32.totalorder %s25, 0
      %p67 = por %p65, %p66
      %p68 = scmp.ne.s32.totalorder %s56, %s57
      %p69 = scmp.eq.s32.totalorder %s26, 1
      %p70 = por %p68, %p69
      %p72 = scmp.ne.s32.totalorder %s57, %s71
      %p73 = scmp.eq.s32.totalorder %s26, 0
      %p74 = por %p72, %p73
      %s76 = sadd.s32 %s75, 1
      %p79 = scmp.eq.s32.totalorder %s20, 1
      %p80 = scmp.ne.s32.totalorder %s75, %s77
      %p81 = scmp.eq.s32.totalorder %s20, 0
      %p82 = por %p80, %p81
      %p83 = scmp.ne.s32.totalorder %s75, %s77
      %p84 = scmp.eq.s32.totalorder %s25, 1
      %p85 = por %p83, %p84
      %p86 = scmp.ne.s32.totalorder %s77, %s78
      %p87 = scmp.eq.s32.totalorder %s25, 0
      %p88 = por %p86, %p87
      %p89 = scmp.ne.s32.totalorder %s77, %s78
      %p90 = scmp.eq.s32.totalorder %s26, 1
      %p91 = por %p89, %p90
      %p93 = scmp.ne.s32.totalorder %s78, %s92
      %p94 = scmp.eq.s32.totalorder %s26, 0
      %p95 = por %p93, %p94
      %s97 = sadd.s32 %s96, 1
      %p100 = scmp.eq.s32.totalorder %s20, 1
      %p101 = scmp.ne.s32.totalorder %s96, %s98
      %p102 = scmp.eq.s32.totalorder %s20, 0
      %p103 = por %p101, %p102
      %p104 = scmp.ne.s32.totalorder %s96, %s98
      %p105 = scmp.eq.s32.totalorder %s25, 1
      %p106 = por %p104, %p105
      %p107 = scmp.ne.s32.totalorder %s98, %s99
      %p108 = scmp.eq.s32.totalorder %s25, 0
      %p109 = por %p107, %p108
      %p110 = scmp.ne.s32.totalorder %s98, %s99
      %p111 = scmp.eq.s32.totalorder %s26, 1
      %p112 = por %p110, %p111
      %p114 = scmp.ne.s32.totalorder %s99, %s113
      %p115 = scmp.eq.s32.totalorder %s26, 0
      %p116 = por %p114, %p115
      %s118 = sadd.s32 %s117, 1
      %p121 = scmp.eq.s32.totalorder %s20, 1
      %p122 = scmp.ne.s32.totalorder %s117, %s119
      %p123 = scmp.eq.s32.totalorder %s20, 0
      %p124 = por %p122, %p123
      %p125 = scmp.ne.s32.totalorder %s117, %s119
      %p126 = scmp.eq.s32.totalorder %s25, 1
      %p127 = por %p125, %p126
      %p128 = scmp.ne.s32.totalorder %s119, %s120
      %p129 = scmp.eq.s32.totalorder %s25, 0
      %p130 = por %p128, %p129
      %p131 = scmp.ne.s32.totalorder %s119, %s120
      %p132 = scmp.eq.s32.totalorder %s26, 1
      %p133 = por %p131, %p132
      %p135 = scmp.ne.s32.totalorder %s120, %s134
      %p136 = scmp.eq.s32.totalorder %s26, 0
      %p137 = por %p135, %p136
      %s138 = ssub.s32 %s20, %s27
      %p139 = scmp.eq.s32.totalorder %s138, 0
      %s141 = sadd.s32 %s140, 1
      %s142 = scalar_select %p139, %s140, %s141
      %p145 = pneg %p139
      %p146 = scmp.eq.s32.totalorder %s20, 1
      %p147 = por %p145, %p146
      %p148 = scmp.ne.s32.totalorder %s140, %s143
      %p149 = scmp.eq.s32.totalorder %s20, 0
      %p150 = por %p148, %p149
      %p151 = scmp.ne.s32.totalorder %s140, %s143
      %p152 = scmp.eq.s32.totalorder %s25, 1
      %p153 = por %p151, %p152
      %p154 = scmp.ne.s32.totalorder %s143, %s144
      %p155 = scmp.eq.s32.totalorder %s25, 0
      %p156 = por %p154, %p155
      %p157 = scmp.ne.s32.totalorder %s143, %s144
      %p158 = scmp.eq.s32.totalorder %s26, 1
      %p159 = por %p157, %p158
      %p161 = scmp.ne.s32.totalorder %s144, %s160
      %p162 = scmp.eq.s32.totalorder %s26, 0
      %p163 = por %p161, %p162
      %s164 = ssub.s32 %s20, %s27
      %p165 = scmp.eq.s32.totalorder %s164, 0
      %s167 = sadd.s32 %s166, 1
      %s168 = scalar_select %p165, %s166, %s167
      %p171 = pneg %p165
      %p172 = scmp.eq.s32.totalorder %s20, 1
      %p173 = por %p171, %p172
      %p174 = scmp.ne.s32.totalorder %s166, %s169
      %p175 = scmp.eq.s32.totalorder %s20, 0
      %p176 = por %p174, %p175
      %p177 = scmp.ne.s32.totalorder %s166, %s169
      %p178 = scmp.eq.s32.totalorder %s25, 1
      %p179 = por %p177, %p178
      %p180 = scmp.ne.s32.totalorder %s169, %s170
      %p181 = scmp.eq.s32.totalorder %s25, 0
      %p182 = por %p180, %p181
      %p183 = scmp.ne.s32.totalorder %s169, %s170
      %p184 = scmp.eq.s32.totalorder %s26, 1
      %p185 = por %p183, %p184
      %p187 = scmp.ne.s32.totalorder %s170, %s186
      %p188 = scmp.eq.s32.totalorder %s26, 0
      %p189 = por %p187, %p188
      %p190 = scmp.le.s32.totalorder 1, %s20
      %p191 = scmp.lt.s32.totalorder %s20, 3
      %p192 = pnand %p190, %p191
      %p193 = pneg %p192
      // Predicated region
      $region9: #{tpu_custom_call.1} parent=5 // pred_check
        _
      $region10: #{tpu_custom_call.1} parent=5 // pred_check_branch
        %195 = sbr.rel (%p192) target = $region12
      $region11: #{tpu_custom_call.1} parent=5 // pred_region
        %s196 = ssub.s32 %s20, 1
        // Predicated region
        $region13: #{tpu_custom_call.1} parent=11 // pred_check
          %p197 = pneg %p67
        $region14: #{tpu_custom_call.1} parent=11 // pred_check_branch
          %199 = sbr.rel (%p197) target = $region16
        $region15: #{tpu_custom_call.1} parent=11 // pred_region
          %201 = vsyncadd [#allocation6], 0
          %s203 = sshll.u32 %s1, 4
          %s204 = int_to_ptr.hbm [resolvable:$true] %s203
          %s205 = sshll.u32 [#allocation5], 4
          %s206 = int_to_ptr.vmem [resolvable:$true] %s205
          %208 = dma.hbm_to_vmem [thread:$0]  %s204, 16, %s206, [#allocation6]
        $region16: #{tpu_custom_call.1} parent=11 // pred_fallthru
          _
        // Predicated region
        $region17: #{tpu_custom_call.1} parent=11 // pred_check
          %p209 = pneg %p88
        $region18: #{tpu_custom_call.1} parent=11 // pred_check_branch
          %211 = sbr.rel (%p209) target = $region20
        $region19: #{tpu_custom_call.1} parent=11 // pred_region
          %213 = vsyncadd [#allocation6], 0
          %s215 = sshll.u32 %s2, 4
          %s216 = int_to_ptr.hbm [resolvable:$true] %s215
          %s217 = sshll.u32 [#allocation7], 4
          %s218 = int_to_ptr.vmem [resolvable:$true] %s217
          %220 = dma.hbm_to_vmem [thread:$0]  %s216, 16, %s218, [#allocation6]
        $region20: #{tpu_custom_call.1} parent=11 // pred_fallthru
          _
        // Predicated region
        $region21: #{tpu_custom_call.1} parent=11 // pred_check
          %p221 = pneg %p109
        $region22: #{tpu_custom_call.1} parent=11 // pred_check_branch
          %223 = sbr.rel (%p221) target = $region24
        $region23: #{tpu_custom_call.1} parent=11 // pred_region
          %225 = vsyncadd [#allocation9], 0
          %s226 = sshll.u32 %s3, 4
          %s227 = int_to_ptr.hbm [resolvable:$true] %s226
          %s228 = sshll.u32 [#allocation8], 4
          %s229 = int_to_ptr.vmem [resolvable:$true] %s228
          %234 = dma.hbm_to_vmem [thread:$0]  %s227, 1024, %s229, [#allocation9], 64, 64, 4
        $region24: #{tpu_custom_call.1} parent=11 // pred_fallthru
          _
        // Predicated region
        $region25: #{tpu_custom_call.1} parent=11 // pred_check
          %p235 = pneg %p130
        $region26: #{tpu_custom_call.1} parent=11 // pred_check_branch
          %237 = sbr.rel (%p235) target = $region28
        $region27: #{tpu_custom_call.1} parent=11 // pred_region
          %239 = vsyncadd [#allocation9], 0
          %s241 = sshll.u32 %s4, 4
          %s242 = int_to_ptr.hbm [resolvable:$true] %s241
          %s243 = sshll.u32 [#allocation10], 4
          %s244 = int_to_ptr.vmem [resolvable:$true] %s243
          %246 = dma.hbm_to_vmem [thread:$0]  %s242, 16, %s244, [#allocation9]
        $region28: #{tpu_custom_call.1} parent=11 // pred_fallthru
          _
      $region12: #{tpu_custom_call.1} parent=5 // pred_fallthru
        _
      %p247 = scmp.lt.s32.totalorder %s20, 2
      // Predicated region
      $region29: #{tpu_custom_call.1} parent=5 // pred_check
        %p248 = pneg %p247
      $region30: #{tpu_custom_call.1} parent=5 // pred_check_branch
        %250 = sbr.rel (%p248) target = $region32
      $region31: #{tpu_custom_call.1} parent=5 // pred_region
        // Predicated region
        $region33: #{tpu_custom_call.1} parent=31 // pred_check
          %p251 = pneg %p40
        $region34: #{tpu_custom_call.1} parent=31 // pred_check_branch
          %253 = sbr.rel (%p251) target = $region36
        $region35: #{tpu_custom_call.1} parent=31 // pred_region
          %s254 = sand.u32 %s30, 1
          %s255 = scalar_lea.sflag [#allocation3], %s254
          %s256 = sand.u32 %s30, 1
          %s257 = smul.addr %s256, 8
          %s258 = scalar_lea.vmem [#allocation2], %s257
          %260 = vsyncadd %s255, 0
          %s261 = smul.addr %s20, 8
          %s262 = scalar_lea.hbm %s0, %s261
          %s264 = sshll.u32 %s262, 4
          %s265 = int_to_ptr.hbm [resolvable:$true] %s264
          %s266 = sshll.u32 %s258, 4
          %s267 = int_to_ptr.vmem [resolvable:$true] %s266
          %269 = dma.hbm_to_vmem [thread:$0]  %s265, 128, %s267, %s255
        $region36: #{tpu_custom_call.1} parent=31 // pred_fallthru
          _
        // Predicated region
        $region37: #{tpu_custom_call.1} parent=31 // pred_check
          %p270 = pneg %p150
        $region38: #{tpu_custom_call.1} parent=31 // pred_check_branch
          %272 = sbr.rel (%p270) target = $region40
        $region39: #{tpu_custom_call.1} parent=31 // pred_region
          %p273 = scmp.lt.s32.totalorder %s20, 1
          %s274 = scalar_select %p273, %s20, 1
          %s275 = smul.addr %s274, 2
          %s276 = scalar_lea.vmem %s5, %s275
        $region40: #{tpu_custom_call.1} parent=31 // pred_fallthru
          _
      $region32: #{tpu_custom_call.1} parent=5 // pred_fallthru
        _
      %p277 = scmp.le.s32.totalorder 1, %s20
      %p278 = scmp.lt.s32.totalorder %s20, 3
      %p279 = pnand %p277, %p278
      %p280 = pneg %p279
      // Predicated region
      $region41: #{tpu_custom_call.1} parent=5 // pred_check
        _
      $region42: #{tpu_custom_call.1} parent=5 // pred_check_branch
        %282 = sbr.rel (%p279) target = $region44
      $region43: #{tpu_custom_call.1} parent=5 // pred_region
        %s283 = ssub.s32 %s20, 1
        %s284 = sand.u32 %s33, 1
        %s285 = scalar_lea.sflag [#allocation3], %s284
        %s286 = sand.u32 %s33, 1
        %s287 = smul.addr %s286, 8
        %s288 = scalar_lea.vmem [#allocation2], %s287
        // Predicated region
        $region45: #{tpu_custom_call.1} parent=43 // pred_check
          %p289 = pneg %p46
        $region46: #{tpu_custom_call.1} parent=43 // pred_check_branch
          %291 = sbr.rel (%p289) target = $region48
        $region47: #{tpu_custom_call.1} parent=43 // pred_region
          %293 = dma.done %s285, 128
        $region48: #{tpu_custom_call.1} parent=43 // pred_fallthru
          _
        // Predicated region
        $region49: #{tpu_custom_call.1} parent=43 // pred_check
          %p294 = pneg %p67
        $region50: #{tpu_custom_call.1} parent=43 // pred_check_branch
          %296 = sbr.rel (%p294) target = $region52
        $region51: #{tpu_custom_call.1} parent=43 // pred_region
          %298 = dma.done [#allocation6], 16
        $region52: #{tpu_custom_call.1} parent=43 // pred_fallthru
          _
        // Predicated region
        $region53: #{tpu_custom_call.1} parent=43 // pred_check
          %p299 = pneg %p88
        $region54: #{tpu_custom_call.1} parent=43 // pred_check_branch
          %301 = sbr.rel (%p299) target = $region56
        $region55: #{tpu_custom_call.1} parent=43 // pred_region
          %303 = dma.done [#allocation6], 16
        $region56: #{tpu_custom_call.1} parent=43 // pred_fallthru
          _
        // Predicated region
        $region57: #{tpu_custom_call.1} parent=43 // pred_check
          %p304 = pneg %p109
        $region58: #{tpu_custom_call.1} parent=43 // pred_check_branch
          %306 = sbr.rel (%p304) target = $region60
        $region59: #{tpu_custom_call.1} parent=43 // pred_region
          %308 = dma.done [#allocation9], 1024
        $region60: #{tpu_custom_call.1} parent=43 // pred_fallthru
          _
        // Predicated region
        $region61: #{tpu_custom_call.1} parent=43 // pred_check
          %p309 = pneg %p130
        $region62: #{tpu_custom_call.1} parent=43 // pred_check_branch
          %311 = sbr.rel (%p309) target = $region64
        $region63: #{tpu_custom_call.1} parent=43 // pred_region
          %313 = dma.done [#allocation9], 16
        $region64: #{tpu_custom_call.1} parent=43 // pred_fallthru
          _
        %s314 = sand.u32 %s33, 1
        %s315 = scalar_lea.sflag [#allocation3], %s314
        %s316 = sand.u32 %s33, 1
        %s317 = smul.addr %s316, 8
        %s318 = scalar_lea.vmem [#allocation2], %s317
        %p319 = pneg %p46
        %p320 = pneg %p43
        %p321 = pneg %p67
        %p322 = pneg %p64
        %p323 = pneg %p88
        %p324 = pneg %p85
        %p325 = pneg %p109
        %p326 = pneg %p106
        %p327 = pneg %p130
        %p328 = pneg %p127
        %p329 = scmp.lt.s32.totalorder %s25, 1
        %s330 = scalar_select %p329, %s25, 1
        %s331 = smul.addr %s330, 2
        %s332 = scalar_lea.vmem %s5, %s331
        %p333 = pneg %p156
        %p334 = pneg %p153
        %p335 = pneg %p182
        %p336 = pneg %p179
        %s337 = sand.u32 %s169, 1
        %s338 = scalar_lea.sflag [#allocation4], %s337
        %s339 = sand.u32 %s169, 1
        %s340 = smul.addr %s339, 8
        %s341 = scalar_lea.vmem [#allocation11], %s340
        %p342 = scmp.lt.s32.totalorder %s25, 1
        %s343 = scalar_select %p342, %s25, 1
        %s344 = smul.addr %s343, 2
        %s345 = scalar_lea.vmem %s5, %s344
        %v346 = vld [vmem:[%s288] sm:$0xff]
        %347 = vadd.xlane.f32.xlu0 %v346
        %v348 = vpop.xlane.xlu0 %347
        %v349 = vrcp.pop 128.0
        %v350 = vmul.f32 128.0, %v349
        %v351 = vsub.f32 1.0, %v350
        %v352 = vmul.f32 %v349, %v351
        %v353 = vadd.f32 %v349, %v352
        %vm354 = vweird.f32 %v349
        %v355 = vsel %vm354, %v349, %v353
        %v356 = vmul.f32 %v348, %v355
        %v357 = vsub.f32 %v346, %v356
        %v358 = vmul.f32 %v357, %v357
        %359 = vadd.xlane.f32.xlu0 %v358
        %v360 = vpop.xlane.xlu0 %359
        %v361 = vmul.f32 %v360, %v355
        %v362 = vadd.f32 %v361, 1e-05
        %v363 = vrsqrt.pop %v362
        %v364 = vmul.f32 %v363, %v362
        %v365 = vmul.f32 %v364, %v363
        %v366 = vmul.f32 0.5, %v365
        %v367 = vsub.f32 1.5, %v366
        %v368 = vmul.f32 %v363, %v367
        %vm369 = vweird.f32 %v362
        %vm370 = vweird.f32 %v363
        %vm371 = vmor %vm369, %vm370
        %v372 = vsel %vm371, %v363, %v368
        %v373 = vmul.f32 %v357, %v372
        %v374 = vld [vmem:[#allocation5] sm:$0x1]
        %v376 = vperm.slane %v374, 0
        %v378 = vmul.f32 %v373, %v376
        %v379 = vld [vmem:[#allocation7] sm:$0x1]
        %v381 = vperm.slane %v379, 0
        %v383 = vadd.f32 %v378, %v381
        %v384 = vpack.c.bf16 %v383, %v383
        %v385 = vld [vmem:[#allocation8] sm:$0xf]
        %v386 = vld [vmem:[#allocation8 + $0x4] sm:$0xf]
        %v387 = vld [vmem:[#allocation8 + $0x8] sm:$0xf]
        %v388 = vld [vmem:[#allocation8 + $0xc] sm:$0xf]
        %v389 = vld [vmem:[#allocation8 + $0x10] sm:$0xf]
        %v390 = vld [vmem:[#allocation8 + $0x14] sm:$0xf]
        %v391 = vld [vmem:[#allocation8 + $0x18] sm:$0xf]
        %v392 = vld [vmem:[#allocation8 + $0x1c] sm:$0xf]
        %v393 = vld [vmem:[#allocation8 + $0x20] sm:$0xf]
        %v394 = vld [vmem:[#allocation8 + $0x24] sm:$0xf]
        %v395 = vld [vmem:[#allocation8 + $0x28] sm:$0xf]
        %v396 = vld [vmem:[#allocation8 + $0x2c] sm:$0xf]
        %v397 = vld [vmem:[#allocation8 + $0x30] sm:$0xf]
        %v398 = vld [vmem:[#allocation8 + $0x34] sm:$0xf]
        %v399 = vld [vmem:[#allocation8 + $0x38] sm:$0xf]
        %v400 = vld [vmem:[#allocation8 + $0x3c] sm:$0xf]
        %v401 = vld [vmem:[#allocation10] sm:$0x1]
        %v403 = vperm.slane %v401, 0
        %v421 = vunpack.c.l.b16 %v385
        %v422 = vunpack.c.l.b16 %v386
        %v423 = vunpack.c.l.b16 %v387
        %v424 = vunpack.c.l.b16 %v388
        %v425 = vunpack.c.l.b16 %v389
        %v426 = vunpack.c.l.b16 %v390
        %v427 = vunpack.c.l.b16 %v391
        %v428 = vunpack.c.l.b16 %v392
        %v429 = vunpack.c.l.b16 %v393
        %v430 = vunpack.c.l.b16 %v394
        %v431 = vunpack.c.l.b16 %v395
        %v432 = vunpack.c.l.b16 %v396
        %v433 = vunpack.c.l.b16 %v397
        %v434 = vunpack.c.l.b16 %v398
        %v435 = vunpack.c.l.b16 %v399
        %v436 = vunpack.c.l.b16 %v400
        %v437 = vpack.c.b16 %v422, %v421
        %v438 = vpack.c.b16 %v424, %v423
        %v439 = vpack.c.b16 %v426, %v425
        %v440 = vpack.c.b16 %v428, %v427
        %v441 = vpack.c.b16 %v430, %v429
        %v442 = vpack.c.b16 %v432, %v431
        %v443 = vpack.c.b16 %v434, %v433
        %v444 = vpack.c.b16 %v436, %v435
        %453 = vmatpush.bf16.msra.mxu0 %v444
        %454 = vmatpush.bf16.msra.mxu0 %v443
        %455 = vmatpush.bf16.msra.mxu0 %v442
        %456 = vmatpush.bf16.msra.mxu0 %v441
        %457 = vmatpush.bf16.msra.mxu0 %v440
        %458 = vmatpush.bf16.msra.mxu0 %v439
        %459 = vmatpush.bf16.msra.mxu0 %v438
        %460 = vmatpush.bf16.msra.mxu0 %v437
        %461 = vmatmul.bf16.gmra.mxu0 %v384
        %v462 = vpop.f32.mrf.mxu0
        %v463 = vadd.f32 %v403, %v462
        %v464 = vpop.f32.mrf.mxu0
        %465 = vdwg.mxu0
        %v466 = vld [vmem:[%s345] sm:$0x3]
        %v467 = vunpack.c.0.s8 %v466
        %v468 = vand.u32 %v467, 255
        %vm469 = vcmp.ge.s32.totalorder %v468, 26
        %v470 = vmul.f32 %v463, 1.1130434
        %v471 = vsel %vm469, %v470, 0.0
        %v472 = vadd.f32 %v346, %v471
        %473 = vst [vmem:[%s341] sm:$0xff] %v472
        %s474 = sand.u32 %s169, 1
        %s475 = scalar_lea.sflag [#allocation4], %s474
        %s476 = sand.u32 %s169, 1
        %s477 = smul.addr %s476, 8
        %s478 = scalar_lea.vmem [#allocation11], %s477
        // Predicated region
        $region65: #{tpu_custom_call.1} parent=43 // pred_check
          %p479 = pneg %p179
        $region66: #{tpu_custom_call.1} parent=43 // pred_check_branch
          %481 = sbr.rel (%p479) target = $region68
        $region67: #{tpu_custom_call.1} parent=43 // pred_region
          %483 = vsyncadd %s475, 0
          %s484 = smul.addr %s25, 8
          %s485 = scalar_lea.hbm %s6, %s484
          %s487 = sshll.u32 %s478, 4
          %s488 = int_to_ptr.vmem [resolvable:$true] %s487
          %s489 = sshll.u32 %s485, 4
          %s490 = int_to_ptr.hbm [resolvable:$true] %s489
          %492 = dma.vmem_to_hbm [thread:$0]  %s488, 128, %s490, %s475
        $region68: #{tpu_custom_call.1} parent=43 // pred_fallthru
          _
      $region44: #{tpu_custom_call.1} parent=5 // pred_fallthru
        _
      %p493 = scmp.le.s32.totalorder 2, %s20
      // Predicated region
      $region69: #{tpu_custom_call.1} parent=5 // pred_check
        %p494 = pneg %p493
      $region70: #{tpu_custom_call.1} parent=5 // pred_check_branch
        %496 = sbr.rel (%p494) target = $region72
      $region71: #{tpu_custom_call.1} parent=5 // pred_region
        %s497 = ssub.s32 %s20, 2
        // Predicated region
        $region73: #{tpu_custom_call.1} parent=71 // pred_check
          %p498 = pneg %p185
        $region74: #{tpu_custom_call.1} parent=71 // pred_check_branch
          %500 = sbr.rel (%p498) target = $region76
        $region75: #{tpu_custom_call.1} parent=71 // pred_region
          %s501 = sand.u32 %s170, 1
          %s502 = scalar_lea.sflag [#allocation4], %s501
          %s503 = sand.u32 %s170, 1
          %s504 = smul.addr %s503, 8
          %s505 = scalar_lea.vmem [#allocation11], %s504
          %507 = dma.done %s502, 128
        $region76: #{tpu_custom_call.1} parent=71 // pred_fallthru
          _
      $region72: #{tpu_custom_call.1} parent=5 // pred_fallthru
        _
    $region6: #{tpu_custom_call.1} parent=1 // loop_footer
      %s24 = sadd.s32 1, %s20
    $region7: #{tpu_custom_call.1} parent=1 // loop_footer_branch
      %19 = sbr.rel target = $region3
    $region8: #{tpu_custom_call.1} parent=1 // loop_exit
      _
    %508 = vsyncpa [#allocation3], 1
    %s509 = scalar_lea.sflag [#allocation3], 1
    %510 = vsyncpa %s509, 1
    %511 = vsyncpa [#allocation6], 1
    %512 = vsyncpa [#allocation9], 1
    %513 = vsyncpa [#allocation4], 1
    %s514 = scalar_lea.sflag [#allocation4], 1
    %515 = vsyncpa %s514, 1

</llo_original>
